<compile_context>
chip_gen: v7x
topology: tpu7x:2x2x1
jax: 0.10.0
libtpu: 0.0.40
codegen_flags: <defaults>
</compile_context>

<pallas_src>
import functools

import jax
import jax.numpy as jnp
from jax.experimental import pallas as pl

BN_EPS = 1e-5
KPAD = 16    # fan-in (contraction) pad: multiple of 8 sublanes, covers all layers
NPAD = 128   # fan-out pad: one full vreg lane width


def _log_sigmoid(x):
    # Numerically stable LogSigmoid: min(x, 0) - log1p(exp(-|x|))
    return jnp.minimum(x, 0.0) - jnp.log1p(jnp.exp(-jnp.abs(x)))


def _batchnorm_train(h):
    # BatchNorm1d(affine=False), training mode: batch mean, biased batch var.
    # Two-pass form matches PyTorch numerics exactly.
    mean = jnp.mean(h, axis=0, keepdims=True)
    var = jnp.mean((h - mean) * (h - mean), axis=0, keepdims=True)
    return (h - mean) * jax.lax.rsqrt(var + BN_EPS)


def _ae_kernel(x_ref, w_ref, b_ref, out_ref):
    # x_ref:   [B, input_dim]   unpadded input (full-array block)
    # w_ref:   [4, 16, 128]     packed zero-padded weights (ew1, ew2, dw1, dw2)
    # b_ref:   [4, 128]         packed zero-padded biases  (eb1, eb2, db1, db2)
    # out_ref: [B, 256]         lanes [0:128) = x_hat_pad, [128:256) = z_pad
    x = x_ref[...]
    b = b_ref[...]

    # ---- encoder ----
    # Padded weight rows are zero, so padded/stale activation lanes never leak.
    h = jnp.dot(x, w_ref[0], preferred_element_type=jnp.float32) + b[0:1, :]
    h = _log_sigmoid(_batchnorm_train(h))

    z = jnp.dot(h[:, :KPAD], w_ref[1], preferred_element_type=jnp.float32) + b[1:2, :]
    z = _log_sigmoid(_batchnorm_train(z))
    out_ref[:, NPAD:2 * NPAD] = z          # lane-dense, 128-aligned store

    # ---- decoder ----
    d = jnp.dot(z[:, :KPAD], w_ref[2], preferred_element_type=jnp.float32) + b[2:3, :]
    d = _log_sigmoid(d)

    x_hat = jnp.dot(d[:, :KPAD], w_ref[3], preferred_element_type=jnp.float32) + b[3:4, :]
    out_ref[:, 0:NPAD] = x_hat             # lane-dense, 128-aligned store


def _full_spec(shape):
    # Single full-array block resident in VMEM (no grid).
    return pl.BlockSpec(shape, lambda: tuple(0 for _ in shape))


def pack_params(params):
    """One-time packing of the 8 Linear params into 2 small padded operands."""
    def pad_w(w):
        assert w.shape[0] <= KPAD and w.shape[1] <= NPAD
        return jnp.zeros((KPAD, NPAD), jnp.float32).at[: w.shape[0], : w.shape[1]].set(w)

    def pad_b(bias):
        bias = bias.reshape(-1)
        return jnp.zeros((NPAD,), jnp.float32).at[: bias.shape[0]].set(bias)

    w_all = jnp.stack([pad_w(params["ew1"]), pad_w(params["ew2"]),
                       pad_w(params["dw1"]), pad_w(params["dw2"])])
    b_all = jnp.stack([pad_b(params["eb1"]), pad_b(params["eb2"]),
                       pad_b(params["db1"]), pad_b(params["db2"])])
    return w_all, b_all


@functools.partial(jax.jit, static_argnames=("input_dim", "latent_dim"))
def autoencoder_forward(x, w_all, b_all, *, input_dim, latent_dim):
    """x: [B, input_dim] f32.  w_all: [4,16,128], b_all: [4,128] (see pack_params)."""
    B = x.shape[0]
    out = pl.pallas_call(
        _ae_kernel,
        out_shape=jax.ShapeDtypeStruct((B, 2 * NPAD), jnp.float32),
        in_specs=[
            _full_spec((B, input_dim)),
            _full_spec((4, KPAD, NPAD)),
            _full_spec((4, NPAD)),
        ],
        out_specs=_full_spec((B, 2 * NPAD)),
    )(x, w_all, b_all)

    x_hat = out[:, :input_dim]
    z = out[:, NPAD:NPAD + latent_dim]
    return x_hat, z


def init_params(key, input_dim, latent_dim, hidden):
    """nn.Linear-style init U(-1/sqrt(fan_in), +1/sqrt(fan_in)); weights stored
    pre-transposed as [in, out], biases as [1, out]."""
    def linear(k, fan_in, fan_out):
        kw, kb = jax.random.split(k)
        bound = 1.0 / jnp.sqrt(fan_in)
        w = jax.random.uniform(kw, (fan_in, fan_out), jnp.float32, -bound, bound)
        b = jax.random.uniform(kb, (1, fan_out), jnp.float32, -bound, bound)
        return w, b

    k1, k2, k3, k4 = jax.random.split(key, 4)
    ew1, eb1 = linear(k1, input_dim, hidden)      # encoder Linear(input_dim, hidden)
    ew2, eb2 = linear(k2, hidden, latent_dim)     # encoder Linear(hidden, latent_dim)
    dw1, db1 = linear(k3, latent_dim, hidden)     # decoder Linear(latent_dim, hidden)
    dw2, db2 = linear(k4, hidden, input_dim)      # decoder Linear(hidden, input_dim)
    return dict(ew1=ew1, eb1=eb1, ew2=ew2, eb2=eb2,
                dw1=dw1, db1=db1, dw2=dw2, db2=db2)


def reference_forward(x, p):
    """Pure-JAX reference (PyTorch training-mode BatchNorm semantics)."""
    def bn(h):
        mean = jnp.mean(h, axis=0, keepdims=True)
        var = jnp.mean((h - mean) ** 2, axis=0, keepdims=True)
        return (h - mean) * jax.lax.rsqrt(var + BN_EPS)

    h = _log_sigmoid(bn(x @ p["ew1"] + p["eb1"]))
    z = _log_sigmoid(bn(h @ p["ew2"] + p["eb2"]))
    d = _log_sigmoid(z @ p["dw1"] + p["db1"])
    x_hat = d @ p["dw2"] + p["db2"]
    return x_hat, z


if __name__ == "__main__":
    B, INPUT_DIM, LATENT_DIM, HIDDEN = 8, 16, 4, 6

    key = jax.random.PRNGKey(0)
    kx, kp = jax.random.split(key)
    x = jax.random.normal(kx, (B, INPUT_DIM), jnp.float32)
    params = init_params(kp, INPUT_DIM, LATENT_DIM, HIDDEN)
    w_all, b_all = pack_params(params)   # one-time packing, not per-call work

    x_hat, z = autoencoder_forward(x, w_all, b_all,
                                   input_dim=INPUT_DIM, latent_dim=LATENT_DIM)
    jax.block_until_ready((x_hat, z))

    x_hat_ref, z_ref = reference_forward(x, params)
    assert x_hat.shape == (B, INPUT_DIM) and z.shape == (B, LATENT_DIM)
    assert jnp.allclose(x_hat, x_hat_ref, atol=1e-4, rtol=1e-4)
    assert jnp.allclose(z, z_ref, atol=1e-4, rtol=1e-4)

    print("KERNEL_OK")
</pallas_src>

<mosaic_0001>
module attributes {stable_mosaic.version = 11 : i64} {
  func.func @_ae_kernel(%arg0: memref<8x16xf32, #tpu.memory_space<vmem>>, %arg1: memref<4x16x128xf32, #tpu.memory_space<vmem>>, %arg2: memref<4x128xf32, #tpu.memory_space<vmem>>, %arg3: memref<8x256xf32, #tpu.memory_space<vmem>>) attributes {dimension_semantics = [], scalar_prefetch = 0 : i64, scratch_operands = 0 : i64, tpu.core_type = #tpu.core_type<tc>} {
    %c0 = arith.constant 0 : index
    %c0_0 = arith.constant 0 : index
    %0 = vector.load %arg0[%c0, %c0_0] : memref<8x16xf32, #tpu.memory_space<vmem>>, vector<8x16xf32>
    %c0_1 = arith.constant 0 : index
    %c0_2 = arith.constant 0 : index
    %1 = vector.load %arg2[%c0_1, %c0_2] : memref<4x128xf32, #tpu.memory_space<vmem>>, vector<4x128xf32>
    %c0_3 = arith.constant 0 : index
    %c0_4 = arith.constant 0 : index
    %c0_5 = arith.constant 0 : index
    %2 = vector.load %arg1[%c0_3, %c0_4, %c0_5] : memref<4x16x128xf32, #tpu.memory_space<vmem>>, vector<1x16x128xf32>
    %3 = vector.shape_cast %2 : vector<1x16x128xf32> to vector<16x128xf32>
    %cst = arith.constant dense<0.000000e+00> : vector<8x128xf32>
    %4 = tpu.matmul %0, %3, %cst {dimension_numbers = #tpu.dot_dimension_numbers<[1], [0], [0], [1], [0, 0, 1, 1], [], []>} : vector<8x16xf32>, vector<16x128xf32>, vector<8x128xf32> -> vector<8x128xf32>
    %5 = vector.extract_strided_slice %1 {offsets = [0, 0], sizes = [1, 128], strides = [1, 1]} : vector<4x128xf32> to vector<1x128xf32>
    %6 = vector.broadcast %5 : vector<1x128xf32> to vector<8x128xf32>
    %7 = arith.addf %4, %6 : vector<8x128xf32>
    %cst_6 = arith.constant dense<0.000000e+00> : vector<128xf32>
    %8 = vector.multi_reduction <add>, %7, %cst_6 [0] : vector<8x128xf32> to vector<128xf32>
    %9 = vector.shape_cast %8 : vector<128xf32> to vector<1x128xf32>
    %cst_7 = arith.constant 8.000000e+00 : f32
    %10 = vector.broadcast %cst_7 : f32 to vector<1x128xf32>
    %11 = arith.divf %9, %10 : vector<1x128xf32>
    %12 = vector.broadcast %11 : vector<1x128xf32> to vector<8x128xf32>
    %13 = arith.subf %7, %12 : vector<8x128xf32>
    %14 = vector.broadcast %11 : vector<1x128xf32> to vector<8x128xf32>
    %15 = arith.subf %7, %14 : vector<8x128xf32>
    %16 = arith.mulf %13, %15 : vector<8x128xf32>
    %cst_8 = arith.constant dense<0.000000e+00> : vector<128xf32>
    %17 = vector.multi_reduction <add>, %16, %cst_8 [0] : vector<8x128xf32> to vector<128xf32>
    %18 = vector.shape_cast %17 : vector<128xf32> to vector<1x128xf32>
    %cst_9 = arith.constant 8.000000e+00 : f32
    %19 = vector.broadcast %cst_9 : f32 to vector<1x128xf32>
    %20 = arith.divf %18, %19 : vector<1x128xf32>
    %21 = vector.broadcast %11 : vector<1x128xf32> to vector<8x128xf32>
    %22 = arith.subf %7, %21 : vector<8x128xf32>
    %cst_10 = arith.constant 9.99999974E-6 : f32
    %23 = vector.broadcast %cst_10 : f32 to vector<1x128xf32>
    %24 = arith.addf %20, %23 : vector<1x128xf32>
    %25 = math.rsqrt %24 : vector<1x128xf32>
    %26 = vector.broadcast %25 : vector<1x128xf32> to vector<8x128xf32>
    %27 = arith.mulf %22, %26 : vector<8x128xf32>
    %cst_11 = arith.constant 0.000000e+00 : f32
    %28 = vector.broadcast %cst_11 : f32 to vector<8x128xf32>
    %29 = arith.minimumf %27, %28 : vector<8x128xf32>
    %30 = math.absf %27 : vector<8x128xf32>
    %cst_12 = arith.constant 0.000000e+00 : f32
    %31 = vector.broadcast %cst_12 : f32 to vector<8x128xf32>
    %32 = arith.subf %31, %30 : vector<8x128xf32>
    %33 = math.exp %32 : vector<8x128xf32>
    %34 = math.log1p %33 : vector<8x128xf32>
    %35 = arith.subf %29, %34 : vector<8x128xf32>
    %36 = vector.extract_strided_slice %35 {offsets = [0, 0], sizes = [8, 16], strides = [1, 1]} : vector<8x128xf32> to vector<8x16xf32>
    %c1 = arith.constant 1 : index
    %c0_13 = arith.constant 0 : index
    %c0_14 = arith.constant 0 : index
    %37 = vector.load %arg1[%c1, %c0_13, %c0_14] : memref<4x16x128xf32, #tpu.memory_space<vmem>>, vector<1x16x128xf32>
    %38 = vector.shape_cast %37 : vector<1x16x128xf32> to vector<16x128xf32>
    %cst_15 = arith.constant dense<0.000000e+00> : vector<8x128xf32>
    %39 = tpu.matmul %36, %38, %cst_15 {dimension_numbers = #tpu.dot_dimension_numbers<[1], [0], [0], [1], [0, 0, 1, 1], [], []>} : vector<8x16xf32>, vector<16x128xf32>, vector<8x128xf32> -> vector<8x128xf32>
    %40 = vector.extract_strided_slice %1 {offsets = [1, 0], sizes = [1, 128], strides = [1, 1]} : vector<4x128xf32> to vector<1x128xf32>
    %41 = vector.broadcast %40 : vector<1x128xf32> to vector<8x128xf32>
    %42 = arith.addf %39, %41 : vector<8x128xf32>
    %cst_16 = arith.constant dense<0.000000e+00> : vector<128xf32>
    %43 = vector.multi_reduction <add>, %42, %cst_16 [0] : vector<8x128xf32> to vector<128xf32>
    %44 = vector.shape_cast %43 : vector<128xf32> to vector<1x128xf32>
    %cst_17 = arith.constant 8.000000e+00 : f32
    %45 = vector.broadcast %cst_17 : f32 to vector<1x128xf32>
    %46 = arith.divf %44, %45 : vector<1x128xf32>
    %47 = vector.broadcast %46 : vector<1x128xf32> to vector<8x128xf32>
    %48 = arith.subf %42, %47 : vector<8x128xf32>
    %49 = vector.broadcast %46 : vector<1x128xf32> to vector<8x128xf32>
    %50 = arith.subf %42, %49 : vector<8x128xf32>
    %51 = arith.mulf %48, %50 : vector<8x128xf32>
    %cst_18 = arith.constant dense<0.000000e+00> : vector<128xf32>
    %52 = vector.multi_reduction <add>, %51, %cst_18 [0] : vector<8x128xf32> to vector<128xf32>
    %53 = vector.shape_cast %52 : vector<128xf32> to vector<1x128xf32>
    %cst_19 = arith.constant 8.000000e+00 : f32
    %54 = vector.broadcast %cst_19 : f32 to vector<1x128xf32>
    %55 = arith.divf %53, %54 : vector<1x128xf32>
    %56 = vector.broadcast %46 : vector<1x128xf32> to vector<8x128xf32>
    %57 = arith.subf %42, %56 : vector<8x128xf32>
    %cst_20 = arith.constant 9.99999974E-6 : f32
    %58 = vector.broadcast %cst_20 : f32 to vector<1x128xf32>
    %59 = arith.addf %55, %58 : vector<1x128xf32>
    %60 = math.rsqrt %59 : vector<1x128xf32>
    %61 = vector.broadcast %60 : vector<1x128xf32> to vector<8x128xf32>
    %62 = arith.mulf %57, %61 : vector<8x128xf32>
    %cst_21 = arith.constant 0.000000e+00 : f32
    %63 = vector.broadcast %cst_21 : f32 to vector<8x128xf32>
    %64 = arith.minimumf %62, %63 : vector<8x128xf32>
    %65 = math.absf %62 : vector<8x128xf32>
    %cst_22 = arith.constant 0.000000e+00 : f32
    %66 = vector.broadcast %cst_22 : f32 to vector<8x128xf32>
    %67 = arith.subf %66, %65 : vector<8x128xf32>
    %68 = math.exp %67 : vector<8x128xf32>
    %69 = math.log1p %68 : vector<8x128xf32>
    %70 = arith.subf %64, %69 : vector<8x128xf32>
    %c0_23 = arith.constant 0 : index
    %c128 = arith.constant 128 : index
    %71 = vector.load %arg3[%c0_23, %c128] : memref<8x256xf32, #tpu.memory_space<vmem>>, vector<8x128xf32>
    tpu.vector_store %arg3[%c0_23, %c128], %70 {strides = array<i32>} : memref<8x256xf32, #tpu.memory_space<vmem>>, vector<8x128xf32>,
    %72 = vector.extract_strided_slice %70 {offsets = [0, 0], sizes = [8, 16], strides = [1, 1]} : vector<8x128xf32> to vector<8x16xf32>
    %c2 = arith.constant 2 : index
    %c0_24 = arith.constant 0 : index
    %c0_25 = arith.constant 0 : index
    %73 = vector.load %arg1[%c2, %c0_24, %c0_25] : memref<4x16x128xf32, #tpu.memory_space<vmem>>, vector<1x16x128xf32>
    %74 = vector.shape_cast %73 : vector<1x16x128xf32> to vector<16x128xf32>
    %cst_26 = arith.constant dense<0.000000e+00> : vector<8x128xf32>
    %75 = tpu.matmul %72, %74, %cst_26 {dimension_numbers = #tpu.dot_dimension_numbers<[1], [0], [0], [1], [0, 0, 1, 1], [], []>} : vector<8x16xf32>, vector<16x128xf32>, vector<8x128xf32> -> vector<8x128xf32>
    %76 = vector.extract_strided_slice %1 {offsets = [2, 0], sizes = [1, 128], strides = [1, 1]} : vector<4x128xf32> to vector<1x128xf32>
    %77 = vector.broadcast %76 : vector<1x128xf32> to vector<8x128xf32>
    %78 = arith.addf %75, %77 : vector<8x128xf32>
    %cst_27 = arith.constant 0.000000e+00 : f32
    %79 = vector.broadcast %cst_27 : f32 to vector<8x128xf32>
    %80 = arith.minimumf %78, %79 : vector<8x128xf32>
    %81 = math.absf %78 : vector<8x128xf32>
    %cst_28 = arith.constant 0.000000e+00 : f32
    %82 = vector.broadcast %cst_28 : f32 to vector<8x128xf32>
    %83 = arith.subf %82, %81 : vector<8x128xf32>
    %84 = math.exp %83 : vector<8x128xf32>
    %85 = math.log1p %84 : vector<8x128xf32>
    %86 = arith.subf %80, %85 : vector<8x128xf32>
    %87 = vector.extract_strided_slice %86 {offsets = [0, 0], sizes = [8, 16], strides = [1, 1]} : vector<8x128xf32> to vector<8x16xf32>
    %c3 = arith.constant 3 : index
    %c0_29 = arith.constant 0 : index
    %c0_30 = arith.constant 0 : index
    %88 = vector.load %arg1[%c3, %c0_29, %c0_30] : memref<4x16x128xf32, #tpu.memory_space<vmem>>, vector<1x16x128xf32>
    %89 = vector.shape_cast %88 : vector<1x16x128xf32> to vector<16x128xf32>
    %cst_31 = arith.constant dense<0.000000e+00> : vector<8x128xf32>
    %90 = tpu.matmul %87, %89, %cst_31 {dimension_numbers = #tpu.dot_dimension_numbers<[1], [0], [0], [1], [0, 0, 1, 1], [], []>} : vector<8x16xf32>, vector<16x128xf32>, vector<8x128xf32> -> vector<8x128xf32>
    %91 = vector.extract_strided_slice %1 {offsets = [3, 0], sizes = [1, 128], strides = [1, 1]} : vector<4x128xf32> to vector<1x128xf32>
    %92 = vector.broadcast %91 : vector<1x128xf32> to vector<8x128xf32>
    %93 = arith.addf %90, %92 : vector<8x128xf32>
    %c0_32 = arith.constant 0 : index
    %c0_33 = arith.constant 0 : index
    %94 = vector.load %arg3[%c0_32, %c0_33] : memref<8x256xf32, #tpu.memory_space<vmem>>, vector<8x128xf32>
    tpu.vector_store %arg3[%c0_32, %c0_33], %93 {strides = array<i32>} : memref<8x256xf32, #tpu.memory_space<vmem>>, vector<8x128xf32>,
    return
  }
}

</mosaic_0001>

<llo_original>
// kernel: autoencoder_forward.1
$region0: #{autoencoder_forward.1}
  #allocation0 [shape = 'u32[]', space=smem, size = 0x4, offset = 0x4, fixed_abs, tag = 'smem constant byte address 0x4 - core index']
  #allocation1 [shape = 'u32[144,128]{1,0:T(1,128)}', space=vmem, size = 0x12000, scoped, tag = 'internal scratch']
  %s0 = inlined_call_operand.hbm [shape: f32[8,16], index: 0, kind: input, shape index: {}]
  %s1 = inlined_call_operand.hbm [shape: f32[4,16,128], index: 1, kind: input, shape index: {}]
  %s2 = inlined_call_operand.vmem [shape: f32[4,128], index: 2, kind: input, shape index: {}]
  %s3 = inlined_call_operand.vmem [shape: f32[8,256], index: 3, kind: output, shape index: {}]
  %s4 = sld [smem:[#allocation0]]
  $region30: #{autoencoder_forward.1} parent=0
    _
  %s6 = ssub.s32 1, %s4
  %s7 = scalar_select 0, %s6, %s4
  $region1: #{autoencoder_forward.1} parent=0
    #allocation2 [shape = 'u8[4096]{0}', space=vmem, size = 0x1000, scoped, tag = 'input window, operand 0, single buffered']
    #allocation3 [shape = 's32[1]{0}', space=sflag, size = 0x4, scoped, tag = 'scoped memory for autoencoder_forward.1']
    #allocation4 [shape = 'u8[32768]{0}', space=vmem, size = 0x8000, scoped, tag = 'input window, operand 1, single buffered']
    #allocation5 [shape = 's32[1]{0}', space=sflag, size = 0x4, scoped, tag = 'scoped memory for autoencoder_forward.1']
    %8 = vsyncpa [#allocation3], 0
    %9 = vsyncpa [#allocation5], 0
    // Predicated region
    $region2: #{autoencoder_forward.1} parent=1 // pred_check
      _
    $region3: #{autoencoder_forward.1} parent=1 // pred_check_branch
      %11 = sbr.rel (0) target = $region5
    $region4: #{autoencoder_forward.1} parent=1 // pred_region
      %s13 = ssub.s32 128, 128
      %14 = vsyncadd [#allocation3], %s13
      %s16 = sshll.u32 [#allocation2], 4
      %s17 = int_to_ptr.vmem [resolvable:$true] %s16
      %19 = dma.hbm_to_vmem [thread:$0]  %s0, 128, %s17, [#allocation3]
    $region5: #{autoencoder_forward.1} parent=1 // pred_fallthru
      _
    // Predicated region
    $region6: #{autoencoder_forward.1} parent=1 // pred_check
      _
    $region7: #{autoencoder_forward.1} parent=1 // pred_check_branch
      %21 = sbr.rel (0) target = $region9
    $region8: #{autoencoder_forward.1} parent=1 // pred_region
      %s23 = ssub.s32 1024, 1024
      %24 = vsyncadd [#allocation5], %s23
      %s25 = sshll.u32 [#allocation4], 4
      %s26 = int_to_ptr.vmem [resolvable:$true] %s25
      %31 = dma.hbm_to_vmem [thread:$0]  %s1, 1024, %s26, [#allocation5], 128, 128, 8
    $region9: #{autoencoder_forward.1} parent=1 // pred_fallthru
      _
    // Predicated region
    $region10: #{autoencoder_forward.1} parent=1 // pred_check
      _
    $region11: #{autoencoder_forward.1} parent=1 // pred_check_branch
      %33 = sbr.rel (0) target = $region13
    $region12: #{autoencoder_forward.1} parent=1 // pred_region
      _
    $region13: #{autoencoder_forward.1} parent=1 // pred_fallthru
      _
    // Predicated region
    $region14: #{autoencoder_forward.1} parent=1 // pred_check
      _
    $region15: #{autoencoder_forward.1} parent=1 // pred_check_branch
      %35 = sbr.rel (0) target = $region17
    $region16: #{autoencoder_forward.1} parent=1 // pred_region
      %36 = dma.done [#allocation3], 128
    $region17: #{autoencoder_forward.1} parent=1 // pred_fallthru
      _
    // Predicated region
    $region18: #{autoencoder_forward.1} parent=1 // pred_check
      _
    $region19: #{autoencoder_forward.1} parent=1 // pred_check_branch
      %38 = sbr.rel (0) target = $region21
    $region20: #{autoencoder_forward.1} parent=1 // pred_region
      %39 = dma.done [#allocation5], 1024
    $region21: #{autoencoder_forward.1} parent=1 // pred_fallthru
      _
    %v40 = vld [vmem:[#allocation2] sm:$0xff]
    %v41 = vld [vmem:[%s2] sm:$0xf]
    %v42 = vld [vmem:[#allocation4] sm:$0xff]
    %v43 = vld [vmem:[#allocation4 + $0x8] sm:$0xff]
    %v44 = vlaneseq
    %v45 = vshrl.u32 %v44, 7
    %v46 = vsub.s32 0, %v45
    %v47 = vrot.slane %v41, %v46
    %vm48 = vcmask 130048
    %v50 = vsel %vm48, %v40, 0
    %52 = vmatprep.subr.mxu0 0.0
    %53 = vmatpush1.msra.mxu0 %v42
    %54 = vmatprep.subr.mxu0 0.0
    %55 = vmatpush1.msra.mxu0 %v43
    %56 = vmatprep.subr.mxu0 0.0
    %57 = vmatpush1.msra.mxu0 0.0
    %58 = vmatprep.subr.mxu0 0.0
    %59 = vmatpush1.msra.mxu0 0.0
    %60 = vmatprep.subr.mxu0 0.0
    %61 = vmatpush1.msra.mxu0 0.0
    %62 = vmatprep.subr.mxu0 0.0
    %63 = vmatpush1.msra.mxu0 0.0
    %64 = vmatprep.subr.mxu0 0.0
    %65 = vmatpush1.msra.mxu0 0.0
    %66 = vmatprep.subr.mxu0 0.0
    %67 = vmatpush1.msra.mxu0 0.0
    %68 = vmatprep.subr.mxu0 0.0
    %69 = vmatpush1.msra.mxu0 0.0
    %70 = vmatprep.subr.mxu0 0.0
    %71 = vmatpush1.msra.mxu0 0.0
    %72 = vmatprep.subr.mxu0 0.0
    %73 = vmatpush1.msra.mxu0 0.0
    %74 = vmatprep.subr.mxu0 0.0
    %75 = vmatpush1.msra.mxu0 0.0
    %76 = vmatprep.subr.mxu0 0.0
    %77 = vmatpush1.msra.mxu0 0.0
    %78 = vmatprep.subr.mxu0 0.0
    %79 = vmatpush1.msra.mxu0 0.0
    %80 = vmatprep.subr.mxu0 0.0
    %81 = vmatpush1.msra.mxu0 0.0
    %82 = vmatprep.subr.mxu0 0.0
    %83 = vmatpush1.msra.mxu0 0.0
    %84 = vmatprep.subr.mxu0 0.0
    %85 = vmatpush1.msra.mxu0 0.0
    %86 = vmatprep.subr.mxu0 0.0
    %87 = vmatpush1.msra.mxu0 0.0
    %88 = vmatprep.subr.mxu0 0.0
    %89 = vmatpush1.msra.mxu0 0.0
    %90 = vmatprep.subr.mxu0 0.0
    %91 = vmatpush1.msra.mxu0 0.0
    %92 = vmatprep.subr.mxu0 0.0
    %93 = vmatpush1.msra.mxu0 0.0
    %94 = vmatprep.subr.mxu0 0.0
    %95 = vmatpush1.msra.mxu0 0.0
    %96 = vmatprep.subr.mxu0 0.0
    %97 = vmatpush1.msra.mxu0 0.0
    %98 = vmatprep.subr.mxu0 0.0
    %99 = vmatpush1.msra.mxu0 0.0
    %100 = vmatprep.subr.mxu0 0.0
    %101 = vmatpush1.msra.mxu0 0.0
    %102 = vmatprep.subr.mxu0 0.0
    %103 = vmatpush1.msra.mxu0 0.0
    %104 = vmatprep.subr.mxu0 0.0
    %105 = vmatpush1.msra.mxu0 0.0
    %106 = vmatprep.subr.mxu0 0.0
    %107 = vmatpush1.msra.mxu0 0.0
    %108 = vmatprep.subr.mxu0 0.0
    %109 = vmatpush1.msra.mxu0 0.0
    %110 = vmatprep.subr.mxu0 0.0
    %111 = vmatpush1.msra.mxu0 0.0
    %112 = vmatprep.subr.mxu0 0.0
    %113 = vmatpush1.msra.mxu0 0.0
    %114 = vmatprep.subr.mxu0 0.0
    %115 = vmatpush1.msra.mxu0 0.0
    %116 = vmatprep.mubr.f32.mxu0 0.0
    %117 = vmatmul.mubr.f32.gmra.mrb[0].mxu0 %v50
    %v118 = vpop.f32.mrb[0].mxu0
    %v119 = vadd.f32 %v47, %v118
    %v120 = vpop.f32.mrb[0].mxu0
    %121 = vdwg.mxu0
    %v122 = vrot.slane %v119, 4
    %v123 = vadd.f32 %v119, %v122
    %v124 = vrot.slane %v123, 2
    %v125 = vadd.f32 %v123, %v124
    %v126 = vrot.slane %v125, 1
    %v127 = vadd.f32 %v125, %v126
    %v128 = vrcp.pop 8.0
    %v129 = vmul.f32 %v127, %v128
    %v130 = vsub.f32 %v119, %v129
    %v131 = vmul.f32 %v130, %v130
    %v132 = vrot.slane %v131, 4
    %v133 = vadd.f32 %v131, %v132
    %v134 = vrot.slane %v133, 2
    %v135 = vadd.f32 %v133, %v134
    %v136 = vrot.slane %v135, 1
    %v137 = vadd.f32 %v135, %v136
    %v138 = vmul.f32 %v137, %v128
    %v139 = vadd.f32 %v138, 1e-05
    %v140 = vrsqrt.pop %v139
    %v141 = vmul.f32 %v130, %v140
    %v142 = vmin.f32 %v141, 0.0
    %v143 = vand.u32 2147483647, %v141
    %v144 = vsub.f32 0.0, %v143
    %v145 = vmul.f32 %v144, 1.442695
    %v146 = vpow.pop %v145
    %v147 = vadd.f32 %v146, 1.0
    %v148 = vlog2.pop %v147
    %v149 = vmul.f32 %v148, 0.6931472
    %v150 = vmul.f32 -0.5, %v146
    %v151 = vadd.f32 %v150, 1.0
    %v152 = vmul.f32 %v151, %v146
    %v153 = vand.u32 2147483647, %v146
    %vm154 = vcmp.lt.f32.partialorder %v153, 0.0004427343
    %v155 = vsel %vm154, %v152, %v149
    %v156 = vsub.f32 %v142, %v155
    %s157 = scalar_lea.vmem [#allocation4], 16
    %v158 = vld [vmem:[%s157] sm:$0xff]
    %v159 = vld [vmem:[%s157 + $0x8] sm:$0xff]
    %v160 = vlaneseq
    %v161 = vshrl.u32 %v160, 7
    %v162 = vsub.s32 1, %v161
    %v163 = vrot.slane %v41, %v162
    %v165 = vsel %vm48, %v156, 0
    %167 = vmatprep.subr.mxu0 0.0
    %168 = vmatpush1.msra.mxu0 %v158
    %169 = vmatprep.subr.mxu0 0.0
    %170 = vmatpush1.msra.mxu0 %v159
    %171 = vmatprep.subr.mxu0 0.0
    %172 = vmatpush1.msra.mxu0 0.0
    %173 = vmatprep.subr.mxu0 0.0
    %174 = vmatpush1.msra.mxu0 0.0
    %175 = vmatprep.subr.mxu0 0.0
    %176 = vmatpush1.msra.mxu0 0.0
    %177 = vmatprep.subr.mxu0 0.0
    %178 = vmatpush1.msra.mxu0 0.0
    %179 = vmatprep.subr.mxu0 0.0
    %180 = vmatpush1.msra.mxu0 0.0
    %181 = vmatprep.subr.mxu0 0.0
    %182 = vmatpush1.msra.mxu0 0.0
    %183 = vmatprep.subr.mxu0 0.0
    %184 = vmatpush1.msra.mxu0 0.0
    %185 = vmatprep.subr.mxu0 0.0
    %186 = vmatpush1.msra.mxu0 0.0
    %187 = vmatprep.subr.mxu0 0.0
    %188 = vmatpush1.msra.mxu0 0.0
    %189 = vmatprep.subr.mxu0 0.0
    %190 = vmatpush1.msra.mxu0 0.0
    %191 = vmatprep.subr.mxu0 0.0
    %192 = vmatpush1.msra.mxu0 0.0
    %193 = vmatprep.subr.mxu0 0.0
    %194 = vmatpush1.msra.mxu0 0.0
    %195 = vmatprep.subr.mxu0 0.0
    %196 = vmatpush1.msra.mxu0 0.0
    %197 = vmatprep.subr.mxu0 0.0
    %198 = vmatpush1.msra.mxu0 0.0
    %199 = vmatprep.subr.mxu0 0.0
    %200 = vmatpush1.msra.mxu0 0.0
    %201 = vmatprep.subr.mxu0 0.0
    %202 = vmatpush1.msra.mxu0 0.0
    %203 = vmatprep.subr.mxu0 0.0
    %204 = vmatpush1.msra.mxu0 0.0
    %205 = vmatprep.subr.mxu0 0.0
    %206 = vmatpush1.msra.mxu0 0.0
    %207 = vmatprep.subr.mxu0 0.0
    %208 = vmatpush1.msra.mxu0 0.0
    %209 = vmatprep.subr.mxu0 0.0
    %210 = vmatpush1.msra.mxu0 0.0
    %211 = vmatprep.subr.mxu0 0.0
    %212 = vmatpush1.msra.mxu0 0.0
    %213 = vmatprep.subr.mxu0 0.0
    %214 = vmatpush1.msra.mxu0 0.0
    %215 = vmatprep.subr.mxu0 0.0
    %216 = vmatpush1.msra.mxu0 0.0
    %217 = vmatprep.subr.mxu0 0.0
    %218 = vmatpush1.msra.mxu0 0.0
    %219 = vmatprep.subr.mxu0 0.0
    %220 = vmatpush1.msra.mxu0 0.0
    %221 = vmatprep.subr.mxu0 0.0
    %222 = vmatpush1.msra.mxu0 0.0
    %223 = vmatprep.subr.mxu0 0.0
    %224 = vmatpush1.msra.mxu0 0.0
    %225 = vmatprep.subr.mxu0 0.0
    %226 = vmatpush1.msra.mxu0 0.0
    %227 = vmatprep.subr.mxu0 0.0
    %228 = vmatpush1.msra.mxu0 0.0
    %229 = vmatprep.subr.mxu0 0.0
    %230 = vmatpush1.msra.mxu0 0.0
    %231 = vmatprep.mubr.f32.mxu0 0.0
    %232 = vmatmul.mubr.f32.gmra.mrb[0].mxu0 %v165
    %v233 = vpop.f32.mrb[0].mxu0
    %v234 = vadd.f32 %v163, %v233
    %v235 = vpop.f32.mrb[0].mxu0
    %236 = vdwg.mxu0
    %v237 = vrot.slane %v234, 4
    %v238 = vadd.f32 %v234, %v237
    %v239 = vrot.slane %v238, 2
    %v240 = vadd.f32 %v238, %v239
    %v241 = vrot.slane %v240, 1
    %v242 = vadd.f32 %v240, %v241
    %v243 = vmul.f32 %v242, %v128
    %v244 = vsub.f32 %v234, %v243
    %v245 = vmul.f32 %v244, %v244
    %v246 = vrot.slane %v245, 4
    %v247 = vadd.f32 %v245, %v246
    %v248 = vrot.slane %v247, 2
    %v249 = vadd.f32 %v247, %v248
    %v250 = vrot.slane %v249, 1
    %v251 = vadd.f32 %v249, %v250
    %v252 = vmul.f32 %v251, %v128
    %v253 = vadd.f32 %v252, 1e-05
    %v254 = vrsqrt.pop %v253
    %v255 = vmul.f32 %v244, %v254
    %v256 = vmin.f32 %v255, 0.0
    %v257 = vand.u32 2147483647, %v255
    %v258 = vsub.f32 0.0, %v257
    %v259 = vmul.f32 %v258, 1.442695
    %v260 = vpow.pop %v259
    %v261 = vadd.f32 %v260, 1.0
    %v262 = vlog2.pop %v261
    %v263 = vmul.f32 %v262, 0.6931472
    %v264 = vmul.f32 -0.5, %v260
    %v265 = vadd.f32 %v264, 1.0
    %v266 = vmul.f32 %v265, %v260
    %v267 = vand.u32 2147483647, %v260
    %vm268 = vcmp.lt.f32.partialorder %v267, 0.0004427343
    %v269 = vsel %vm268, %v266, %v263
    %v270 = vsub.f32 %v256, %v269
    %271 = vst [vmem:[%s3 + $0x8] sm:$0xff] %v270
    %s272 = scalar_lea.vmem [#allocation4], 32
    %v273 = vld [vmem:[%s272] sm:$0xff]
    %v274 = vld [vmem:[%s272 + $0x8] sm:$0xff]
    %v275 = vlaneseq
    %v276 = vshrl.u32 %v275, 7
    %v277 = vsub.s32 2, %v276
    %v278 = vrot.slane %v41, %v277
    %v280 = vsel %vm48, %v270, 0
    %282 = vmatprep.subr.mxu0 0.0
    %283 = vmatpush1.msra.mxu0 %v273
    %284 = vmatprep.subr.mxu0 0.0
    %285 = vmatpush1.msra.mxu0 %v274
    %286 = vmatprep.subr.mxu0 0.0
    %287 = vmatpush1.msra.mxu0 0.0
    %288 = vmatprep.subr.mxu0 0.0
    %289 = vmatpush1.msra.mxu0 0.0
    %290 = vmatprep.subr.mxu0 0.0
    %291 = vmatpush1.msra.mxu0 0.0
    %292 = vmatprep.subr.mxu0 0.0
    %293 = vmatpush1.msra.mxu0 0.0
    %294 = vmatprep.subr.mxu0 0.0
    %295 = vmatpush1.msra.mxu0 0.0
    %296 = vmatprep.subr.mxu0 0.0
    %297 = vmatpush1.msra.mxu0 0.0
    %298 = vmatprep.subr.mxu0 0.0
    %299 = vmatpush1.msra.mxu0 0.0
    %300 = vmatprep.subr.mxu0 0.0
    %301 = vmatpush1.msra.mxu0 0.0
    %302 = vmatprep.subr.mxu0 0.0
    %303 = vmatpush1.msra.mxu0 0.0
    %304 = vmatprep.subr.mxu0 0.0
    %305 = vmatpush1.msra.mxu0 0.0
    %306 = vmatprep.subr.mxu0 0.0
    %307 = vmatpush1.msra.mxu0 0.0
    %308 = vmatprep.subr.mxu0 0.0
    %309 = vmatpush1.msra.mxu0 0.0
    %310 = vmatprep.subr.mxu0 0.0
    %311 = vmatpush1.msra.mxu0 0.0
    %312 = vmatprep.subr.mxu0 0.0
    %313 = vmatpush1.msra.mxu0 0.0
    %314 = vmatprep.subr.mxu0 0.0
    %315 = vmatpush1.msra.mxu0 0.0
    %316 = vmatprep.subr.mxu0 0.0
    %317 = vmatpush1.msra.mxu0 0.0
    %318 = vmatprep.subr.mxu0 0.0
    %319 = vmatpush1.msra.mxu0 0.0
    %320 = vmatprep.subr.mxu0 0.0
    %321 = vmatpush1.msra.mxu0 0.0
    %322 = vmatprep.subr.mxu0 0.0
    %323 = vmatpush1.msra.mxu0 0.0
    %324 = vmatprep.subr.mxu0 0.0
    %325 = vmatpush1.msra.mxu0 0.0
    %326 = vmatprep.subr.mxu0 0.0
    %327 = vmatpush1.msra.mxu0 0.0
    %328 = vmatprep.subr.mxu0 0.0
    %329 = vmatpush1.msra.mxu0 0.0
    %330 = vmatprep.subr.mxu0 0.0
    %331 = vmatpush1.msra.mxu0 0.0
    %332 = vmatprep.subr.mxu0 0.0
    %333 = vmatpush1.msra.mxu0 0.0
    %334 = vmatprep.subr.mxu0 0.0
    %335 = vmatpush1.msra.mxu0 0.0
    %336 = vmatprep.subr.mxu0 0.0
    %337 = vmatpush1.msra.mxu0 0.0
    %338 = vmatprep.subr.mxu0 0.0
    %339 = vmatpush1.msra.mxu0 0.0
    %340 = vmatprep.subr.mxu0 0.0
    %341 = vmatpush1.msra.mxu0 0.0
    %342 = vmatprep.subr.mxu0 0.0
    %343 = vmatpush1.msra.mxu0 0.0
    %344 = vmatprep.subr.mxu0 0.0
    %345 = vmatpush1.msra.mxu0 0.0
    %346 = vmatprep.mubr.f32.mxu0 0.0
    %347 = vmatmul.mubr.f32.gmra.mrb[0].mxu0 %v280
    %v348 = vpop.f32.mrb[0].mxu0
    %v349 = vadd.f32 %v278, %v348
    %v350 = vpop.f32.mrb[0].mxu0
    %351 = vdwg.mxu0
    %v352 = vmin.f32 %v349, 0.0
    %v353 = vand.u32 2147483647, %v349
    %v354 = vsub.f32 0.0, %v353
    %v355 = vmul.f32 %v354, 1.442695
    %v356 = vpow.pop %v355
    %v357 = vadd.f32 %v356, 1.0
    %v358 = vlog2.pop %v357
    %v359 = vmul.f32 %v358, 0.6931472
    %v360 = vmul.f32 -0.5, %v356
    %v361 = vadd.f32 %v360, 1.0
    %v362 = vmul.f32 %v361, %v356
    %v363 = vand.u32 2147483647, %v356
    %vm364 = vcmp.lt.f32.partialorder %v363, 0.0004427343
    %v365 = vsel %vm364, %v362, %v359
    %v366 = vsub.f32 %v352, %v365
    %s367 = scalar_lea.vmem [#allocation4], 48
    %v368 = vld [vmem:[%s367] sm:$0xff]
    %v369 = vld [vmem:[%s367 + $0x8] sm:$0xff]
    %v370 = vlaneseq
    %v371 = vshrl.u32 %v370, 7
    %v372 = vsub.s32 3, %v371
    %v373 = vrot.slane %v41, %v372
    %v375 = vsel %vm48, %v366, 0
    %377 = vmatprep.subr.mxu0 0.0
    %378 = vmatpush1.msra.mxu0 %v368
    %379 = vmatprep.subr.mxu0 0.0
    %380 = vmatpush1.msra.mxu0 %v369
    %381 = vmatprep.subr.mxu0 0.0
    %382 = vmatpush1.msra.mxu0 0.0
    %383 = vmatprep.subr.mxu0 0.0
    %384 = vmatpush1.msra.mxu0 0.0
    %385 = vmatprep.subr.mxu0 0.0
    %386 = vmatpush1.msra.mxu0 0.0
    %387 = vmatprep.subr.mxu0 0.0
    %388 = vmatpush1.msra.mxu0 0.0
    %389 = vmatprep.subr.mxu0 0.0
    %390 = vmatpush1.msra.mxu0 0.0
    %391 = vmatprep.subr.mxu0 0.0
    %392 = vmatpush1.msra.mxu0 0.0
    %393 = vmatprep.subr.mxu0 0.0
    %394 = vmatpush1.msra.mxu0 0.0
    %395 = vmatprep.subr.mxu0 0.0
    %396 = vmatpush1.msra.mxu0 0.0
    %397 = vmatprep.subr.mxu0 0.0
    %398 = vmatpush1.msra.mxu0 0.0
    %399 = vmatprep.subr.mxu0 0.0
    %400 = vmatpush1.msra.mxu0 0.0
    %401 = vmatprep.subr.mxu0 0.0
    %402 = vmatpush1.msra.mxu0 0.0
    %403 = vmatprep.subr.mxu0 0.0
    %404 = vmatpush1.msra.mxu0 0.0
    %405 = vmatprep.subr.mxu0 0.0
    %406 = vmatpush1.msra.mxu0 0.0
    %407 = vmatprep.subr.mxu0 0.0
    %408 = vmatpush1.msra.mxu0 0.0
    %409 = vmatprep.subr.mxu0 0.0
    %410 = vmatpush1.msra.mxu0 0.0
    %411 = vmatprep.subr.mxu0 0.0
    %412 = vmatpush1.msra.mxu0 0.0
    %413 = vmatprep.subr.mxu0 0.0
    %414 = vmatpush1.msra.mxu0 0.0
    %415 = vmatprep.subr.mxu0 0.0
    %416 = vmatpush1.msra.mxu0 0.0
    %417 = vmatprep.subr.mxu0 0.0
    %418 = vmatpush1.msra.mxu0 0.0
    %419 = vmatprep.subr.mxu0 0.0
    %420 = vmatpush1.msra.mxu0 0.0
    %421 = vmatprep.subr.mxu0 0.0
    %422 = vmatpush1.msra.mxu0 0.0
    %423 = vmatprep.subr.mxu0 0.0
    %424 = vmatpush1.msra.mxu0 0.0
    %425 = vmatprep.subr.mxu0 0.0
    %426 = vmatpush1.msra.mxu0 0.0
    %427 = vmatprep.subr.mxu0 0.0
    %428 = vmatpush1.msra.mxu0 0.0
    %429 = vmatprep.subr.mxu0 0.0
    %430 = vmatpush1.msra.mxu0 0.0
    %431 = vmatprep.subr.mxu0 0.0
    %432 = vmatpush1.msra.mxu0 0.0
    %433 = vmatprep.subr.mxu0 0.0
    %434 = vmatpush1.msra.mxu0 0.0
    %435 = vmatprep.subr.mxu0 0.0
    %436 = vmatpush1.msra.mxu0 0.0
    %437 = vmatprep.subr.mxu0 0.0
    %438 = vmatpush1.msra.mxu0 0.0
    %439 = vmatprep.subr.mxu0 0.0
    %440 = vmatpush1.msra.mxu0 0.0
    %441 = vmatprep.mubr.f32.mxu0 0.0
    %442 = vmatmul.mubr.f32.gmra.mrb[0].mxu0 %v375
    %v443 = vpop.f32.mrb[0].mxu0
    %v444 = vadd.f32 %v373, %v443
    %v445 = vpop.f32.mrb[0].mxu0
    %446 = vdwg.mxu0
    %447 = vst [vmem:[%s3] sm:$0xff] %v444
    // Predicated region
    $region22: #{autoencoder_forward.1} parent=1 // pred_check
      _
    $region23: #{autoencoder_forward.1} parent=1 // pred_check_branch
      %449 = sbr.rel (0) target = $region25
    $region24: #{autoencoder_forward.1} parent=1 // pred_region
      _
    $region25: #{autoencoder_forward.1} parent=1 // pred_fallthru
      _
    // Predicated region
    $region26: #{autoencoder_forward.1} parent=1 // pred_check
      _
    $region27: #{autoencoder_forward.1} parent=1 // pred_check_branch
      %451 = sbr.rel (0) target = $region29
    $region28: #{autoencoder_forward.1} parent=1 // pred_region
      _
    $region29: #{autoencoder_forward.1} parent=1 // pred_fallthru
      _
    %452 = vsyncpa [#allocation3], 1
    %453 = vsyncpa [#allocation5], 1

</llo_original>
